<compile_context>
chip_gen: v7x
topology: tpu7x:2x2x1
jax: 0.10.0
libtpu: 0.0.40
codegen_flags: <defaults>
</compile_context>

<pallas_src>
import functools

import jax
import jax.numpy as jnp
from jax.experimental import pallas as pl
from jax.experimental.pallas import tpu as pltpu


_NEG_BIG = -1e30  # masked-logit value: exp(_NEG_BIG - m) == 0 -> logsumexp unchanged


def _vmem_capacity_bytes():
    """Physical per-core VMEM (trace-time query); conservative fallback works everywhere."""
    try:
        return int(pltpu.get_tpu_info().vmem_capacity_bytes)
    except Exception:
        return 64 * 1024 * 1024  # v7x-safe fallback


def _kldiv_logsm_kernel(x_ref, t_ref, partial_ref, *, rows_total, cols_valid,
                        block_rows, mask_lanes, mask_rows):
    """One (TM, C_pad) batch tile -> scalar partial sum of KL pointwise terms."""
    x = x_ref[...].astype(jnp.float32)   # (TM, C_pad) logits (may contain OOB garbage)
    t = t_ref[...].astype(jnp.float32)   # (TM, C_pad) target probs

    # In-kernel masking of out-of-bounds lanes (class axis) and rows (last batch tile),
    # applied BEFORE the max / exp / log so garbage (possibly NaN/Inf) never propagates.
    if mask_lanes or mask_rows:
        valid = None
        if mask_lanes:
            lane = jax.lax.broadcasted_iota(jnp.int32, x.shape, 1)
            valid = lane < cols_valid
        if mask_rows:
            row = (jax.lax.broadcasted_iota(jnp.int32, x.shape, 0)
                   + pl.program_id(0) * block_rows)
            rmask = row < rows_total
            valid = rmask if valid is None else (valid & rmask)
        x = jnp.where(valid, x, _NEG_BIG)   # masked logits -> -1e30 (softmax unchanged)
        t = jnp.where(valid, t, 0.0)        # masked targets -> 0 (contribute nothing)

    # Numerically stable log_softmax over the class (lane) axis.
    m = jnp.max(x, axis=1, keepdims=True)
    lse = jnp.log(jnp.sum(jnp.exp(x - m), axis=1, keepdims=True)) + m
    log_probs = x - lse

    # KLDivLoss pointwise term: t * (log t - log_probs) with 0*log(0) := 0.
    # Single clamped-log formulation (no extra transcendentals / selects): when t == 0
    # the product is exactly 0, so masked lanes/rows contribute nothing.
    pointwise = t * (jnp.log(jnp.maximum(t, 1e-30)) - log_probs)

    s = jnp.sum(pointwise)
    # Lane-dense (1, 8, 128) partial-sum block -> unmasked vector store.
    partial_ref[...] = jnp.full(partial_ref.shape, s, dtype=jnp.float32)


def kldiv_with_logsm(inputs, targets, *, block_rows=None):
    """Pallas TPU implementation of KLDivWithLogSM.forward.

    inputs:  (B, C) prediction logits (before softmax), f32 or bf16
    targets: (B, C) target probabilities
    returns: scalar loss (float32), mean over all B*C elements
             (== torch.nn.KLDivLoss(reduction='mean') applied to log_softmax(inputs, dim=1))
    """
    assert inputs.shape == targets.shape and inputs.ndim == 2
    B, C = inputs.shape
    n_total = B * C  # mean over ALL elements of the original tensor

    # Lane density: blocks span classes rounded up to a multiple of 128 (no array padding;
    # the extra lanes are masked in the kernel).
    C_pad = ((C + 127) // 128) * 128

    in_item = jnp.dtype(inputs.dtype).itemsize
    tgt_item = jnp.dtype(targets.dtype).itemsize
    sub = 16 if min(in_item, tgt_item) < 4 else 8   # sublane granularity for block rows

    # Generation-aware VMEM budget: ~3/4 of physical, capped at 100 MiB
    # (=> ~96 MiB on v5e/v6e with 128 MiB physical, ~48 MiB on v7x with 64 MiB physical).
    vmem_limit = min((_vmem_capacity_bytes() * 3) // 4, 100 * 1024 * 1024)

    if block_rows is None:
        # Residency per row of tile: 2 double-buffered input blocks (actual dtypes)
        # plus ~4 f32 temporaries materialized by the body (upcasts, exp, pointwise).
        per_row_bytes = 2 * C_pad * (in_item + tgt_item) + 4 * C_pad * 4
        budget = (vmem_limit * 2) // 3          # headroom inside the scoped limit
        block_rows = max(sub, budget // per_row_bytes)
        block_rows = min(block_rows, 8192)      # big tiles; ~0.35us/step amortized

    B_ceil = ((B + sub - 1) // sub) * sub
    TM = min(int(block_rows), B_ceil)
    TM = max(sub, (TM // sub) * sub)
    # Keep >= 2 tiles whenever the batch allows, so the "parallel" axis can shard across
    # the two TensorCores on v7x (harmless single extra grid step on v5e/v6e).
    if B > sub and TM >= B:
        half = (B + 1) // 2
        TM = max(sub, ((half + sub - 1) // sub) * sub)

    num_tiles = -(-B // TM)
    mask_lanes = C_pad != C
    mask_rows = (B % TM) != 0

    kernel = functools.partial(
        _kldiv_logsm_kernel,
        rows_total=B, cols_valid=C, block_rows=TM,
        mask_lanes=mask_lanes, mask_rows=mask_rows,
    )

    partials = pl.pallas_call(
        kernel,
        out_shape=jax.ShapeDtypeStruct((num_tiles, 8, 128), jnp.float32),
        grid=(num_tiles,),
        in_specs=[
            pl.BlockSpec((TM, C_pad), lambda i: (i, 0)),
            pl.BlockSpec((TM, C_pad), lambda i: (i, 0)),
        ],
        out_specs=pl.BlockSpec((1, 8, 128), lambda i: (i, 0, 0)),
        compiler_params=pltpu.CompilerParams(
            dimension_semantics=("parallel",),   # independent tiles -> megacore OK
            vmem_limit_bytes=int(vmem_limit),
        ),
    )(inputs, targets)

    # Tiny final reduction + mean in plain JAX (divide hoisted out of the kernel).
    return jnp.sum(partials[:, 0, 0]) / jnp.float32(n_total)


def _reference(inputs, targets):
    # Pure-JAX reference matching torch semantics (KLDivLoss reduction='mean').
    log_probs = jax.nn.log_softmax(inputs.astype(jnp.float32), axis=1)
    t = targets.astype(jnp.float32)
    pw = jnp.where(t > 0, t * (jnp.log(jnp.where(t > 0, t, 1.0)) - log_probs), 0.0)
    return jnp.mean(pw)


if __name__ == "__main__":
    key = jax.random.PRNGKey(0)
    k1, k2, k3, k4 = jax.random.split(key, 4)

    # Small shape from the module's (batch_size, num_classes) convention.
    B, C = 8, 32
    inputs = jax.random.normal(k1, (B, C), dtype=jnp.float32)
    targets = jax.nn.softmax(jax.random.normal(k2, (B, C), dtype=jnp.float32), axis=1)

    loss = kldiv_with_logsm(inputs, targets)
    jax.block_until_ready(loss)
    ref = _reference(inputs, targets)
    assert jnp.allclose(loss, ref, atol=1e-5, rtol=1e-5), (loss, ref)

    # Exercises in-kernel lane masking (C=200 -> block 256), multiple batch tiles and a
    # partially masked last tile (B=20 with TM=8 -> 3 tiles, 4 masked rows).
    B2, C2 = 20, 200
    inputs2 = jax.random.normal(k3, (B2, C2), dtype=jnp.float32)
    targets2 = jax.nn.softmax(jax.random.normal(k4, (B2, C2), dtype=jnp.float32), axis=1)

    loss2 = kldiv_with_logsm(inputs2, targets2, block_rows=8)
    jax.block_until_ready(loss2)
    ref2 = _reference(inputs2, targets2)
    assert jnp.allclose(loss2, ref2, atol=1e-5, rtol=1e-5), (loss2, ref2)

    # bf16 logits (HBM-traffic saver on v5e/v6e): auto tile sizing, masked lanes + rows,
    # >=2 tiles. Kernel computes in f32 so it matches the f32 reference on the same values.
    inputs3 = inputs2.astype(jnp.bfloat16)
    loss3 = kldiv_with_logsm(inputs3, targets2)
    jax.block_until_ready(loss3)
    ref3 = _reference(inputs3, targets2)
    assert jnp.allclose(loss3, ref3, atol=1e-4, rtol=1e-4), (loss3, ref3)

    print("KERNEL_OK")
</pallas_src>

<mosaic_0001>
module attributes {stable_mosaic.version = 11 : i64} {
  func.func @_kldiv_logsm_kernel(%arg0: i32, %arg1: memref<8x128xf32, #tpu.memory_space<vmem>>, %arg2: memref<8x128xf32, #tpu.memory_space<vmem>>, %arg3: memref<1x8x128xf32, #tpu.memory_space<vmem>>) attributes {dimension_semantics = [#tpu.dimension_semantics<parallel>], iteration_bounds = array<i64: 1>, scalar_prefetch = 0 : i64, scratch_operands = 0 : i64, tpu.core_type = #tpu.core_type<tc>, window_params = [{transform_indices = @transform_0, window_bounds = array<i64: 8, 128>}, {transform_indices = @transform_1, window_bounds = array<i64: 8, 128>}, {transform_indices = @transform_2, window_bounds = array<i64: 1, 8, 128>}]} {
    %c0 = arith.constant 0 : index
    %c0_0 = arith.constant 0 : index
    %0 = vector.load %arg1[%c0, %c0_0] : memref<8x128xf32, #tpu.memory_space<vmem>>, vector<8x128xf32>
    %c0_1 = arith.constant 0 : index
    %c0_2 = arith.constant 0 : index
    %1 = vector.load %arg2[%c0_1, %c0_2] : memref<8x128xf32, #tpu.memory_space<vmem>>, vector<8x128xf32>
    %2 = tpu.iota {dimensions = array<i32: 1>} : vector<8x128xi32>
    %c32_i32 = arith.constant 32 : i32
    %3 = vector.broadcast %c32_i32 : i32 to vector<8x128xi32>
    %4 = arith.cmpi slt, %2, %3 : vector<8x128xi32>
    %cst = arith.constant -1.000000e+30 : f32
    %5 = vector.broadcast %cst : f32 to vector<8x128xf32>
    %6 = arith.select %4, %0, %5 : vector<8x128xi1>, vector<8x128xf32>
    %cst_3 = arith.constant 0.000000e+00 : f32
    %7 = vector.broadcast %cst_3 : f32 to vector<8x128xf32>
    %8 = arith.select %4, %1, %7 : vector<8x128xi1>, vector<8x128xf32>
    %cst_4 = arith.constant dense<0xFF800000> : vector<8xf32>
    %9 = vector.multi_reduction <maximumf>, %6, %cst_4 [1] : vector<8x128xf32> to vector<8xf32>
    %10 = vector.shape_cast %9 : vector<8xf32> to vector<8x1xf32>
    %11 = vector.broadcast %10 : vector<8x1xf32> to vector<8x128xf32>
    %12 = arith.subf %6, %11 : vector<8x128xf32>
    %13 = math.exp %12 : vector<8x128xf32>
    %cst_5 = arith.constant dense<0.000000e+00> : vector<8xf32>
    %14 = vector.multi_reduction <add>, %13, %cst_5 [1] : vector<8x128xf32> to vector<8xf32>
    %15 = vector.shape_cast %14 : vector<8xf32> to vector<8x1xf32>
    %16 = math.log %15 : vector<8x1xf32>
    %17 = arith.addf %16, %10 : vector<8x1xf32>
    %18 = vector.broadcast %17 : vector<8x1xf32> to vector<8x128xf32>
    %19 = arith.subf %6, %18 : vector<8x128xf32>
    %cst_6 = arith.constant 1.000000e-30 : f32
    %20 = vector.broadcast %cst_6 : f32 to vector<8x128xf32>
    %21 = arith.maximumf %8, %20 : vector<8x128xf32>
    %22 = math.log %21 : vector<8x128xf32>
    %23 = arith.subf %22, %19 : vector<8x128xf32>
    %24 = arith.mulf %8, %23 : vector<8x128xf32>
    %25 = vector.shape_cast %24 : vector<8x128xf32> to vector<1x8x128xf32>
    %cst_7 = arith.constant dense<0.000000e+00> : vector<1xf32>
    %26 = vector.multi_reduction <add>, %25, %cst_7 [1, 2] : vector<1x8x128xf32> to vector<1xf32>
    %27 = vector.shape_cast %26 : vector<1xf32> to vector<1x1x1xf32>
    %28 = vector.extract %27[0, 0, 0] : f32 from vector<1x1x1xf32>
    %29 = vector.broadcast %28 : f32 to vector<1x8x128xf32>
    %c0_8 = arith.constant 0 : index
    %c0_9 = arith.constant 0 : index
    %c0_10 = arith.constant 0 : index
    %30 = vector.load %arg3[%c0_8, %c0_9, %c0_10] : memref<1x8x128xf32, #tpu.memory_space<vmem>>, vector<1x8x128xf32>
    tpu.vector_store %arg3[%c0_8, %c0_9, %c0_10], %29 {strides = array<i32>} : memref<1x8x128xf32, #tpu.memory_space<vmem>>, vector<1x8x128xf32>,
    return
  }
  func.func @transform_0(%arg0: i32) -> (i32, i32) {
    %c0_i32 = arith.constant 0 : i32
    %c0_i32_0 = arith.constant 0 : i32
    return %arg0, %c0_i32 : i32, i32
  }
  func.func @transform_1(%arg0: i32) -> (i32, i32) {
    %c0_i32 = arith.constant 0 : i32
    %c0_i32_0 = arith.constant 0 : i32
    return %arg0, %c0_i32 : i32, i32
  }
  func.func @transform_2(%arg0: i32) -> (i32, i32, i32) {
    %c0_i32 = arith.constant 0 : i32
    %c0_i32_0 = arith.constant 0 : i32
    %c0_i32_1 = arith.constant 0 : i32
    return %arg0, %c0_i32, %c0_i32_0 : i32, i32, i32
  }
}

</mosaic_0001>

<llo_original>
// kernel: tpu_custom_call.1
$region0: #{tpu_custom_call.1}
  #allocation0 [shape = 'u32[]', space=smem, size = 0x4, offset = 0x4, fixed_abs, tag = 'smem constant byte address 0x4 - core index']
  #allocation1 [shape = 'u32[144,128]{1,0:T(1,128)}', space=vmem, size = 0x12000, scoped, tag = 'internal scratch']
  %s0 = inlined_call_operand.hbm [shape: f32[8,32], index: 0, kind: input, shape index: {}]
  %s1 = inlined_call_operand.hbm [shape: f32[8,32], index: 1, kind: input, shape index: {}]
  %s2 = inlined_call_operand.hbm [shape: f32[1,8,128], index: 2, kind: output, shape index: {}]
  %s3 = sld [smem:[#allocation0]]
  $region26: #{tpu_custom_call.1} parent=0
    _
  %s5 = ssub.s32 1, %s3
  %s6 = scalar_select 0, %s5, %s3
  $region1: #{tpu_custom_call.1} parent=0
    #allocation2 [shape = 'u8[4096]{0}', space=vmem, size = 0x1000, scoped, tag = 'input window, operand 0, single buffered']
    #allocation3 [shape = 's32[1]{0}', space=sflag, size = 0x4, scoped, tag = 'scoped memory for tpu_custom_call.1']
    #allocation4 [shape = 's32[1]{0}', space=sflag, size = 0x4, scoped, tag = 'scoped memory for tpu_custom_call.1']
    #allocation5 [shape = 'u8[4096]{0}', space=vmem, size = 0x1000, scoped, tag = 'input window, operand 1, single buffered']
    #allocation6 [shape = 's32[1]{0}', space=sflag, size = 0x4, scoped, tag = 'scoped memory for tpu_custom_call.1']
    #allocation7 [shape = 'u8[4096]{0}', space=vmem, size = 0x1000, scoped, tag = 'output window, operand 0, single buffered']
    %7 = vsyncpa [#allocation3], 0
    %8 = vsyncpa [#allocation6], 0
    %9 = vsyncpa [#allocation4], 0
    // Predicated region
    $region2: #{tpu_custom_call.1} parent=1 // pred_check
      _
    $region3: #{tpu_custom_call.1} parent=1 // pred_check_branch
      %11 = sbr.rel (0) target = $region5
    $region4: #{tpu_custom_call.1} parent=1 // pred_region
      %s13 = ssub.s32 128, 128
      %14 = vsyncadd [#allocation3], %s13
      %s16 = sshll.u32 [#allocation2], 4
      %s17 = int_to_ptr.vmem [resolvable:$true] %s16
      %19 = dma.hbm_to_vmem [thread:$0]  %s0, 128, %s17, [#allocation3]
    $region5: #{tpu_custom_call.1} parent=1 // pred_fallthru
      _
    // Predicated region
    $region6: #{tpu_custom_call.1} parent=1 // pred_check
      _
    $region7: #{tpu_custom_call.1} parent=1 // pred_check_branch
      %21 = sbr.rel (0) target = $region9
    $region8: #{tpu_custom_call.1} parent=1 // pred_region
      %s23 = ssub.s32 128, 128
      %24 = vsyncadd [#allocation6], %s23
      %s26 = sshll.u32 [#allocation5], 4
      %s27 = int_to_ptr.vmem [resolvable:$true] %s26
      %29 = dma.hbm_to_vmem [thread:$0]  %s1, 128, %s27, [#allocation6]
    $region9: #{tpu_custom_call.1} parent=1 // pred_fallthru
      _
    // Predicated region
    $region10: #{tpu_custom_call.1} parent=1 // pred_check
      _
    $region11: #{tpu_custom_call.1} parent=1 // pred_check_branch
      %31 = sbr.rel (0) target = $region13
    $region12: #{tpu_custom_call.1} parent=1 // pred_region
      %32 = dma.done [#allocation3], 128
    $region13: #{tpu_custom_call.1} parent=1 // pred_fallthru
      _
    // Predicated region
    $region14: #{tpu_custom_call.1} parent=1 // pred_check
      _
    $region15: #{tpu_custom_call.1} parent=1 // pred_check_branch
      %34 = sbr.rel (0) target = $region17
    $region16: #{tpu_custom_call.1} parent=1 // pred_region
      %35 = dma.done [#allocation6], 128
    $region17: #{tpu_custom_call.1} parent=1 // pred_fallthru
      _
    %v36 = vld [vmem:[#allocation2] sm:$0xff]
    %v37 = vld [vmem:[#allocation5] sm:$0xff]
    %v38 = vlaneseq
    %v39 = vand.u32 %v38, 127
    %vm40 = vcmp.lt.s32.totalorder %v39, 32
    %v41 = vsel %vm40, %v36, -1e+30
    %v42 = vsel %vm40, %v37, 0.0
    %43 = vmax.xlane.f32.xlu0 %v41
    %v44 = vpop.xlane.xlu0 %43
    %v45 = vsub.f32 %v41, %v44
    %v46 = vmul.f32 %v45, 1.442695
    %v47 = vpow.pop %v46
    %48 = vadd.xlane.f32.xlu0 %v47
    %v49 = vpop.xlane.xlu0 %48
    %v50 = vlog2.pop %v49
    %v51 = vmul.f32 %v50, 0.6931472
    %v52 = vadd.f32 %v51, %v44
    %v53 = vsub.f32 %v41, %v52
    %v54 = vmax.f32 %v42, 1e-30
    %v55 = vlog2.pop %v54
    %v56 = vmul.f32 %v55, 0.6931472
    %v57 = vsub.f32 %v56, %v53
    %v58 = vmul.f32 %v42, %v57
    %59 = vadd.xlane.f32.xlu0 %v58
    %v60 = vpop.xlane.xlu0 %59
    %v61 = vrot.slane %v60, 4
    %v62 = vadd.f32 %v60, %v61
    %v63 = vrot.slane %v62, 2
    %v64 = vadd.f32 %v62, %v63
    %v65 = vrot.slane %v64, 1
    %v66 = vadd.f32 %v64, %v65
    %s67 = vtos %v66
    %v68 = vstv %s67
    %69 = vst [vmem:[#allocation7] sm:$0xff] %v68
    // Predicated region
    $region18: #{tpu_custom_call.1} parent=1 // pred_check
      _
    $region19: #{tpu_custom_call.1} parent=1 // pred_check_branch
      %71 = sbr.rel (0) target = $region21
    $region20: #{tpu_custom_call.1} parent=1 // pred_region
      %s73 = ssub.s32 128, 128
      %74 = vsyncadd [#allocation4], %s73
      %s76 = sshll.u32 [#allocation7], 4
      %s77 = int_to_ptr.vmem [resolvable:$true] %s76
      %79 = dma.vmem_to_hbm [thread:$0]  %s77, 128, %s2, [#allocation4]
    $region21: #{tpu_custom_call.1} parent=1 // pred_fallthru
      _
    // Predicated region
    $region22: #{tpu_custom_call.1} parent=1 // pred_check
      _
    $region23: #{tpu_custom_call.1} parent=1 // pred_check_branch
      %81 = sbr.rel (0) target = $region25
    $region24: #{tpu_custom_call.1} parent=1 // pred_region
      %82 = dma.done [#allocation4], 128
    $region25: #{tpu_custom_call.1} parent=1 // pred_fallthru
      _
    %83 = vsyncpa [#allocation3], 1
    %84 = vsyncpa [#allocation6], 1
    %85 = vsyncpa [#allocation4], 1

</llo_original>
